<compile_context>
chip_gen: v7x
topology: tpu7x:2x2x1
jax: 0.10.0
libtpu: 0.0.40
codegen_flags: <defaults>
</compile_context>

<pallas_src>
import math

import jax
import jax.numpy as jnp
from jax import lax
from jax.experimental import pallas as pl
from jax.experimental.pallas import tpu as pltpu


# ----------------------------------------------------------------------------
# Kernel
# ----------------------------------------------------------------------------
def _make_kernel(h_resident: bool):
    """Grid = (row_tiles, n_rel); r (relations) is the innermost reduction axis.
    o_ref's block index is constant over r, so it is the VMEM accumulator."""

    def kernel(a_ref, h_ref, o_ref):
        r = pl.program_id(1)
        # Resident H: full (n_rel, Np, Fp) stack lives in VMEM, index by r.
        # Streamed H: per-relation (1, Np, Fp) block.
        h = h_ref[r] if h_resident else h_ref[0]

        ah = jnp.dot(a_ref[0], h, preferred_element_type=jnp.float32)
        contrib = jnp.maximum(ah, 0.0)

        @pl.when(r == 0)
        def _first():
            o_ref[...] = contrib            # direct write: no zero-init + add

        @pl.when(r > 0)
        def _accumulate():
            o_ref[...] += contrib

        @pl.when(r == pl.num_programs(1) - 1)
        def _finalize():
            acc = o_ref[...]
            sq = jnp.sum(acc * acc, axis=1, keepdims=True)
            # 1/max(||row||,1e-12) == rsqrt(max(||row||^2,1e-24))  -> EUP slot.
            o_ref[...] = acc * lax.rsqrt(jnp.maximum(sq, 1e-24))

    return kernel


# ----------------------------------------------------------------------------
# Wrapper
# ----------------------------------------------------------------------------
def _round_up(v, m):
    return ((v + m - 1) // m) * m


def _vmem_capacity_bytes():
    try:
        return int(pltpu.get_tpu_info().vmem_capacity_bytes)
    except Exception:
        return 64 * 1024 * 1024  # conservative: v7x per-core VMEM


def dense_multi_dgca(xs, adjs, ws, keep_prob: float = 1.0, *, tm=None):
    """xs: list of (N, D_i); adjs: list of (N, N); ws: list of (D_i, F) -> (N, F)."""
    assert len(xs) == len(adjs) == len(ws)
    # TODO(synk): dropout for keep_prob < 1.0 would need pltpu.prng_*; the
    # module default keep_prob=1.0 (identity) is what we implement.
    assert keep_prob == 1.0

    n_rel = len(xs)
    N = xs[0].shape[0]
    F = ws[0].shape[1]
    f32, bf16 = jnp.float32, jnp.bfloat16

    # Row-tile selection (see header).
    N8 = _round_up(N, 8)
    if tm is None:
        tm = N8 if N8 <= 512 else 256
    tm = min(_round_up(tm, 8), N8)
    Np = _round_up(N, tm)                 # padded node count (multiple of tm)
    Fp = _round_up(F, 128)                # lane-dense output width
    pad_n = Np - N

    # --- Hoisted precompute + pad/stack (single pass, cast to bf16) ---------
    a_stk = jnp.stack([
        a.astype(bf16) if pad_n == 0
        else jnp.pad(a.astype(bf16), ((0, pad_n), (0, pad_n)))
        for a in adjs])

    hs = []
    for x, w in zip(xs, ws):
        h = jnp.dot(x.astype(f32), w.astype(f32),
                    precision=lax.Precision.HIGHEST).astype(bf16)
        if pad_n or Fp != F:
            h = jnp.pad(h, ((0, pad_n), (0, Fp - F)))
        hs.append(h)
    h_stk = jnp.stack(hs)                 # (n_rel, Np, Fp) bf16

    # --- VMEM plan (clamped to physical budget) -----------------------------
    a_bytes = 2 * tm * Np * 2             # double-buffered A row tiles (bf16)
    o_bytes = 2 * tm * Fp * 4             # output tile + writeback buffer (f32)
    h_res_bytes = 2 * n_rel * Np * Fp * 2 # resident H (conservative 2x)
    h_strm_bytes = 2 * Np * Fp * 2        # streamed per-relation H (double buf)
    budget = int(0.75 * _vmem_capacity_bytes())
    h_resident = (a_bytes + o_bytes + h_res_bytes) <= budget
    # TODO(synk): for Np so large that even a streamed (Np, Fp) H block blows
    # the budget, add a k (node-contraction) grid axis and stream (tm,tk)/(tk,Fp).
    vmem_needed = a_bytes + o_bytes + (h_res_bytes if h_resident else h_strm_bytes)
    vmem_limit = min(budget, max(32 * 1024 * 1024, int(1.25 * vmem_needed)))

    if h_resident:
        h_spec = pl.BlockSpec((n_rel, Np, Fp), lambda i, r: (0, 0, 0))   # fetched once
    else:
        h_spec = pl.BlockSpec((1, Np, Fp), lambda i, r: (r, 0, 0))       # streamed

    grid = (Np // tm, n_rel)   # (parallel row tiles, reduction over relations)

    out_full = pl.pallas_call(
        _make_kernel(h_resident),
        out_shape=jax.ShapeDtypeStruct((Np, Fp), f32),
        grid_spec=pltpu.PrefetchScalarGridSpec(
            num_scalar_prefetch=0,
            grid=grid,
            in_specs=[
                pl.BlockSpec((1, tm, Np), lambda i, r: (r, i, 0)),  # A_r row tile
                h_spec,                                             # H_r = X_r @ W_r
            ],
            out_specs=pl.BlockSpec((tm, Fp), lambda i, r: (i, 0)),  # acc over r
        ),
        compiler_params=pltpu.CompilerParams(
            dimension_semantics=("parallel", "arbitrary"),
            vmem_limit_bytes=vmem_limit,
        ),
    )(a_stk, h_stk)

    return out_full[:N, :F]


# ----------------------------------------------------------------------------
# Pure-JAX reference (mirrors the PyTorch forward; high-precision matmuls)
# ----------------------------------------------------------------------------
def dense_multi_dgca_ref(xs, adjs, ws):
    N = xs[0].shape[0]
    F = ws[0].shape[1]
    hp = jax.lax.Precision.HIGHEST
    out = jnp.zeros((N, F), dtype=jnp.float32)
    for x, a, w in zip(xs, adjs, ws):
        xw = jnp.dot(x, w, precision=hp)
        out = out + jax.nn.relu(jnp.dot(a, xw, precision=hp))
    norm = jnp.sqrt(jnp.sum(out * out, axis=1, keepdims=True))
    return out / jnp.maximum(norm, 1e-12)


# ----------------------------------------------------------------------------
# Main
# ----------------------------------------------------------------------------
def init_glorot(key, in_dim, out_dim):
    """Matches decagon's init_glorot: uniform(-r, r), r = sqrt(6/(in+out))."""
    r = math.sqrt(6.0 / (in_dim + out_dim))
    return jax.random.uniform(key, (in_dim, out_dim), jnp.float32, -r, r)


if __name__ == "__main__":
    key = jax.random.PRNGKey(0)

    N = 256                      # number of graph nodes
    input_dims = [32, 64, 48]    # per-relation feature dims
    output_dim = 64
    n_rel = len(input_dims)

    keys = jax.random.split(key, 3 * n_rel)
    xs, adjs, ws = [], [], []
    for i, d in enumerate(input_dims):
        kx, ka, kw = keys[3 * i], keys[3 * i + 1], keys[3 * i + 2]
        xs.append(jax.random.normal(kx, (N, d), jnp.float32))
        adjs.append(jax.random.uniform(ka, (N, N), jnp.float32))
        ws.append(init_glorot(kw, d, output_dim))

    out = dense_multi_dgca(xs, adjs, ws)
    out = jax.block_until_ready(out)

    ref = dense_multi_dgca_ref(xs, adjs, ws)
    assert out.shape == (N, output_dim)
    # Tolerance covers bf16 MXU inputs (f32 accumulation / f32 normalize) vs.
    # the f32 HIGHEST-precision reference.  Outputs are L2-normalized, O(0.1)
    # magnitude, so 5e-3 abs is a few percent relative — catches structural
    # bugs (wrong relu / sum / normalize) while allowing input-rounding noise.
    assert jnp.allclose(out, ref, atol=5e-3, rtol=2e-2), "mismatch vs reference"

    print("KERNEL_OK")
</pallas_src>

<mosaic_0001>
module attributes {stable_mosaic.version = 11 : i64} {
  func.func @kernel(%arg0: i32, %arg1: i32, %arg2: memref<1x256x256xbf16, #tpu.memory_space<vmem>>, %arg3: memref<3x256x128xbf16, #tpu.memory_space<vmem>>, %arg4: memref<256x128xf32, #tpu.memory_space<vmem>>) attributes {dimension_semantics = [#tpu.dimension_semantics<parallel>, #tpu.dimension_semantics<arbitrary>], iteration_bounds = array<i64: 1, 3>, scalar_prefetch = 0 : i64, scratch_operands = 0 : i64, tpu.core_type = #tpu.core_type<tc>, window_params = [{transform_indices = @transform_0, window_bounds = array<i64: 1, 256, 256>}, {pipeline_mode = #tpu.pipeline_mode<synchronous>, transform_indices = @transform_1, window_bounds = array<i64: 3, 256, 128>}, {transform_indices = @transform_2, window_bounds = array<i64: 256, 128>}]} {
    %0 = arith.index_cast %arg1 : i32 to index
    %c0 = arith.constant 0 : index
    %c0_0 = arith.constant 0 : index
    %1 = vector.load %arg3[%0, %c0, %c0_0] : memref<3x256x128xbf16, #tpu.memory_space<vmem>>, vector<1x256x128xbf16>
    %2 = vector.shape_cast %1 : vector<1x256x128xbf16> to vector<256x128xbf16>
    %c0_1 = arith.constant 0 : index
    %c0_2 = arith.constant 0 : index
    %c0_3 = arith.constant 0 : index
    %3 = vector.load %arg2[%c0_1, %c0_2, %c0_3] : memref<1x256x256xbf16, #tpu.memory_space<vmem>>, vector<1x256x256xbf16>
    %4 = vector.shape_cast %3 : vector<1x256x256xbf16> to vector<256x256xbf16>
    %cst = arith.constant dense<0.000000e+00> : vector<256x128xf32>
    %5 = tpu.matmul %4, %2, %cst {dimension_numbers = #tpu.dot_dimension_numbers<[1], [0], [0], [1], [0, 0, 1, 1], [], []>} : vector<256x256xbf16>, vector<256x128xbf16>, vector<256x128xf32> -> vector<256x128xf32>
    %cst_4 = arith.constant 0.000000e+00 : f32
    %6 = vector.broadcast %cst_4 : f32 to vector<256x128xf32>
    %7 = arith.maximumf %5, %6 : vector<256x128xf32>
    %c0_i32 = arith.constant 0 : i32
    %8 = arith.cmpi eq, %arg1, %c0_i32 : i32
    %9 = arith.extui %8 : i1 to i32
    %c0_i32_5 = arith.constant 0 : i32
    %10 = arith.cmpi ne, %9, %c0_i32_5 : i32
    scf.if %10 {
      %c0_9 = arith.constant 0 : index
      %c0_10 = arith.constant 0 : index
      %17 = vector.load %arg4[%c0_9, %c0_10] : memref<256x128xf32, #tpu.memory_space<vmem>>, vector<256x128xf32>
      tpu.vector_store %arg4[%c0_9, %c0_10], %7 {strides = array<i32>} : memref<256x128xf32, #tpu.memory_space<vmem>>, vector<256x128xf32>,
    } else {
    }
    %c0_i32_6 = arith.constant 0 : i32
    %11 = arith.cmpi sgt, %arg1, %c0_i32_6 : i32
    %12 = arith.extui %11 : i1 to i32
    %c0_i32_7 = arith.constant 0 : i32
    %13 = arith.cmpi ne, %12, %c0_i32_7 : i32
    scf.if %13 {
      %c0_9 = arith.constant 0 : index
      %c0_10 = arith.constant 0 : index
      %17 = vector.load %arg4[%c0_9, %c0_10] : memref<256x128xf32, #tpu.memory_space<vmem>>, vector<256x128xf32>
      %18 = arith.addf %17, %7 : vector<256x128xf32>
      %c0_11 = arith.constant 0 : index
      %c0_12 = arith.constant 0 : index
      %19 = vector.load %arg4[%c0_11, %c0_12] : memref<256x128xf32, #tpu.memory_space<vmem>>, vector<256x128xf32>
      tpu.vector_store %arg4[%c0_11, %c0_12], %18 {strides = array<i32>} : memref<256x128xf32, #tpu.memory_space<vmem>>, vector<256x128xf32>,
    } else {
    }
    %c2_i32 = arith.constant 2 : i32
    %14 = arith.cmpi eq, %arg1, %c2_i32 : i32
    %15 = arith.extui %14 : i1 to i32
    %c0_i32_8 = arith.constant 0 : i32
    %16 = arith.cmpi ne, %15, %c0_i32_8 : i32
    scf.if %16 {
      %c0_9 = arith.constant 0 : index
      %c0_10 = arith.constant 0 : index
      %17 = vector.load %arg4[%c0_9, %c0_10] : memref<256x128xf32, #tpu.memory_space<vmem>>, vector<256x128xf32>
      %18 = arith.mulf %17, %17 : vector<256x128xf32>
      %cst_11 = arith.constant dense<0.000000e+00> : vector<256xf32>
      %19 = vector.multi_reduction <add>, %18, %cst_11 [1] : vector<256x128xf32> to vector<256xf32>
      %20 = vector.shape_cast %19 : vector<256xf32> to vector<256x1xf32>
      %cst_12 = arith.constant 1.000000e-24 : f32
      %21 = vector.broadcast %cst_12 : f32 to vector<256x1xf32>
      %22 = arith.maximumf %20, %21 : vector<256x1xf32>
      %23 = math.rsqrt %22 : vector<256x1xf32>
      %24 = vector.broadcast %23 : vector<256x1xf32> to vector<256x128xf32>
      %25 = arith.mulf %17, %24 : vector<256x128xf32>
      %c0_13 = arith.constant 0 : index
      %c0_14 = arith.constant 0 : index
      %26 = vector.load %arg4[%c0_13, %c0_14] : memref<256x128xf32, #tpu.memory_space<vmem>>, vector<256x128xf32>
      tpu.vector_store %arg4[%c0_13, %c0_14], %25 {strides = array<i32>} : memref<256x128xf32, #tpu.memory_space<vmem>>, vector<256x128xf32>,
    } else {
    }
    return
  }
  func.func @transform_0(%arg0: i32, %arg1: i32) -> (i32, i32, i32) {
    %c0_i32 = arith.constant 0 : i32
    %c0_i32_0 = arith.constant 0 : i32
    return %arg1, %arg0, %c0_i32 : i32, i32, i32
  }
  func.func @transform_1(%arg0: i32, %arg1: i32) -> (i32, i32, i32) {
    %c0_i32 = arith.constant 0 : i32
    %c0_i32_0 = arith.constant 0 : i32
    %c0_i32_1 = arith.constant 0 : i32
    %c0_i32_2 = arith.constant 0 : i32
    return %c0_i32, %c0_i32_0, %c0_i32_1 : i32, i32, i32
  }
  func.func @transform_2(%arg0: i32, %arg1: i32) -> (i32, i32) {
    %c0_i32 = arith.constant 0 : i32
    %c0_i32_0 = arith.constant 0 : i32
    return %arg0, %c0_i32 : i32, i32
  }
}

</mosaic_0001>

<llo_original>
// kernel: tpu_custom_call.1
$region0: #{tpu_custom_call.1}
  #allocation0 [shape = 'u32[]', space=smem, size = 0x4, offset = 0x4, fixed_abs, tag = 'smem constant byte address 0x4 - core index']
  #allocation1 [shape = 'u32[144,128]{1,0:T(1,128)}', space=vmem, size = 0x12000, scoped, tag = 'internal scratch']
  %s0 = inlined_call_operand.hbm [shape: bf16[3,256,256], index: 0, kind: input, shape index: {}]
  %s1 = inlined_call_operand.hbm [shape: bf16[3,256,128], index: 1, kind: input, shape index: {}]
  %s2 = inlined_call_operand.hbm [shape: f32[256,128], index: 2, kind: output, shape index: {}]
  %s3 = sld [smem:[#allocation0]]
  $region61: #{tpu_custom_call.1} parent=0
    _
  %s5 = ssub.s32 1, %s3
  %s6 = scalar_select 0, %s5, %s3
  $region1: #{tpu_custom_call.1} parent=0
    #allocation2 [shape = 'u8[262144]{0}', space=vmem, size = 0x40000, scoped, tag = 'input window, operand 0']
    #allocation3 [shape = 's32[2]{0}', space=sflag, size = 0x8, scoped, tag = 'scoped memory for tpu_custom_call.1']
    #allocation4 [shape = 's32[2]{0}', space=sflag, size = 0x8, scoped, tag = 'scoped memory for tpu_custom_call.1']
    #allocation5 [shape = 'u8[196608]{0}', space=vmem, size = 0x30000, scoped, tag = 'input window, operand 1, single buffered']
    #allocation6 [shape = 's32[1]{0}', space=sflag, size = 0x4, scoped, tag = 'scoped memory for tpu_custom_call.1']
    #allocation7 [shape = 'u8[131072]{0}', space=vmem, size = 0x20000, scoped, tag = 'output window, operand 0, single buffered']
    %7 = vsyncpa [#allocation3], 0
    %s8 = scalar_lea.sflag [#allocation3], 1
    %9 = vsyncpa %s8, 0
    %10 = vsyncpa [#allocation6], 0
    %11 = vsyncpa [#allocation4], 0
    loop: start=0, step=1, limit=5
    $region2: #{tpu_custom_call.1} parent=1 // loop_pre_header
      _
    $region3: #{tpu_custom_call.1} parent=1 // loop_header
      %s13 = sphi 0, %s17
      %p14 = scmp.ge.s32.totalorder %s13, 5
      %s20 = sphi 0, %s32
      %s21 = sphi 0, %s28
      %s22 = sphi 0, %s20
      %s23 = sphi 0, %s21
      %s24 = sphi 0, %s22
      %s25 = sphi 0, %s23
      %s37 = sphi 0, %s39
      %s40 = sphi 0, %s37
      %s41 = sphi 0, %s40
      %s57 = sphi 0, %s41
      %s61 = sphi 0, %s61
      %s63 = sphi 0, %s61
      %s64 = sphi 0, %s63
      %s78 = sphi 0, %s64
      %s84 = sphi 0, %s86
      %s87 = sphi 0, %s84
      %s88 = sphi 0, %s87
      %s104 = sphi 0, %s88
    $region4: #{tpu_custom_call.1} parent=1 // loop_header_branch
      %16 = sbr.rel (%p14) target = $region8
    $region5: #{tpu_custom_call.1} parent=1 // loop_body
      %s18 = ssub.s32 %s13, 1
      %s19 = ssub.s32 %s13, 2
      %s26 = sadd.s32 1, %s21
      %p27 = scmp.ge.s32.totalorder %s26, 3
      %s28 = scalar_select %p27, 0, %s26
      %s29 = sadd.s32 1, %s20
      %s30 = scalar_select %p27, %s29, %s20
      %p31 = scmp.ge.s32.totalorder %s30, 1
      %s32 = scalar_select %p31, 0, %s30
      %s33 = ssub.s32 %s21, %s28
      %s34 = ssub.s32 %s20, %s32
      %s35 = sor.u32 %s33, %s34
      %p36 = scmp.eq.s32.totalorder %s35, 0
      %s38 = sadd.s32 %s37, 1
      %s39 = scalar_select %p36, %s37, %s38
      %p42 = pneg %p36
      %p43 = scmp.eq.s32.totalorder %s13, 2
      %p44 = por %p42, %p43
      %p45 = scmp.ne.s32.totalorder %s37, %s40
      %p46 = scmp.eq.s32.totalorder %s13, 0
      %p47 = por %p45, %p46
      %p48 = scmp.ne.s32.totalorder %s37, %s40
      %p49 = scmp.eq.s32.totalorder %s18, 2
      %p50 = por %p48, %p49
      %p51 = scmp.ne.s32.totalorder %s40, %s41
      %p52 = scmp.eq.s32.totalorder %s18, 0
      %p53 = por %p51, %p52
      %p54 = scmp.ne.s32.totalorder %s40, %s41
      %p55 = scmp.eq.s32.totalorder %s19, 2
      %p56 = por %p54, %p55
      %p58 = scmp.ne.s32.totalorder %s41, %s57
      %p59 = scmp.eq.s32.totalorder %s19, 0
      %p60 = por %p58, %p59
      %s62 = sadd.s32 %s61, 1
      %p65 = scmp.eq.s32.totalorder %s13, 2
      %p66 = scmp.ne.s32.totalorder %s61, %s63
      %p67 = scmp.eq.s32.totalorder %s13, 0
      %p68 = por %p66, %p67
      %p69 = scmp.ne.s32.totalorder %s61, %s63
      %p70 = scmp.eq.s32.totalorder %s18, 2
      %p71 = por %p69, %p70
      %p72 = scmp.ne.s32.totalorder %s63, %s64
      %p73 = scmp.eq.s32.totalorder %s18, 0
      %p74 = por %p72, %p73
      %p75 = scmp.ne.s32.totalorder %s63, %s64
      %p76 = scmp.eq.s32.totalorder %s19, 2
      %p77 = por %p75, %p76
      %p79 = scmp.ne.s32.totalorder %s64, %s78
      %p80 = scmp.eq.s32.totalorder %s19, 0
      %p81 = por %p79, %p80
      %s82 = ssub.s32 %s20, %s32
      %p83 = scmp.eq.s32.totalorder %s82, 0
      %s85 = sadd.s32 %s84, 1
      %s86 = scalar_select %p83, %s84, %s85
      %p89 = pneg %p83
      %p90 = scmp.eq.s32.totalorder %s13, 2
      %p91 = por %p89, %p90
      %p92 = scmp.ne.s32.totalorder %s84, %s87
      %p93 = scmp.eq.s32.totalorder %s13, 0
      %p94 = por %p92, %p93
      %p95 = scmp.ne.s32.totalorder %s84, %s87
      %p96 = scmp.eq.s32.totalorder %s18, 2
      %p97 = por %p95, %p96
      %p98 = scmp.ne.s32.totalorder %s87, %s88
      %p99 = scmp.eq.s32.totalorder %s18, 0
      %p100 = por %p98, %p99
      %p101 = scmp.ne.s32.totalorder %s87, %s88
      %p102 = scmp.eq.s32.totalorder %s19, 2
      %p103 = por %p101, %p102
      %p105 = scmp.ne.s32.totalorder %s88, %s104
      %p106 = scmp.eq.s32.totalorder %s19, 0
      %p107 = por %p105, %p106
      %p108 = scmp.le.s32.totalorder 1, %s13
      %p109 = scmp.lt.s32.totalorder %s13, 4
      %p110 = pnand %p108, %p109
      %p111 = pneg %p110
      // Predicated region
      $region9: #{tpu_custom_call.1} parent=5 // pred_check
        _
      $region10: #{tpu_custom_call.1} parent=5 // pred_check_branch
        %113 = sbr.rel (%p110) target = $region12
      $region11: #{tpu_custom_call.1} parent=5 // pred_region
        %s114 = ssub.s32 %s13, 1
        // Predicated region
        $region13: #{tpu_custom_call.1} parent=11 // pred_check
          %p115 = pneg %p74
        $region14: #{tpu_custom_call.1} parent=11 // pred_check_branch
          %117 = sbr.rel (%p115) target = $region16
        $region15: #{tpu_custom_call.1} parent=11 // pred_region
          %s119 = ssub.s32 6144, 6144
          %120 = vsyncadd [#allocation6], %s119
          %s121 = sshll.u32 [#allocation5], 4
          %s122 = int_to_ptr.vmem [resolvable:$true] %s121
          %127 = dma.hbm_to_vmem [thread:$0]  %s1, 6144, %s122, [#allocation6], 64, 64, 4
        $region16: #{tpu_custom_call.1} parent=11 // pred_fallthru
          _
      $region12: #{tpu_custom_call.1} parent=5 // pred_fallthru
        _
      %p128 = scmp.lt.s32.totalorder %s13, 3
      // Predicated region
      $region17: #{tpu_custom_call.1} parent=5 // pred_check
        %p129 = pneg %p128
      $region18: #{tpu_custom_call.1} parent=5 // pred_check_branch
        %131 = sbr.rel (%p129) target = $region20
      $region19: #{tpu_custom_call.1} parent=5 // pred_region
        // Predicated region
        $region21: #{tpu_custom_call.1} parent=19 // pred_check
          %p132 = pneg %p47
        $region22: #{tpu_custom_call.1} parent=19 // pred_check_branch
          %134 = sbr.rel (%p132) target = $region24
        $region23: #{tpu_custom_call.1} parent=19 // pred_region
          %s135 = sand.u32 %s37, 1
          %s136 = scalar_lea.sflag [#allocation3], %s135
          %s137 = sand.u32 %s37, 1
          %s138 = smul.addr %s137, 256
          %s139 = scalar_lea.vmem [#allocation2], %s138
          %s140 = smul.u32 32, %s20
          %s142 = ssub.s32 4096, 4096
          %143 = vsyncadd %s136, %s142
          %s144 = smul.addr %s140, 2
          %s145 = smul.addr %s21, 64
          %s146 = sadd.s32 %s144, %s145
          %s147 = smul.addr %s146, 64
          %s148 = scalar_lea.hbm %s0, %s147
          %s149 = sshll.u32 %s139, 4
          %s150 = int_to_ptr.vmem [resolvable:$true] %s149
          %155 = dma.hbm_to_vmem [thread:$0]  %s148, 4096, %s150, %s136, 128, 128, 8
        $region24: #{tpu_custom_call.1} parent=19 // pred_fallthru
          _
      $region20: #{tpu_custom_call.1} parent=5 // pred_fallthru
        _
      %p156 = scmp.le.s32.totalorder 1, %s13
      %p157 = scmp.lt.s32.totalorder %s13, 4
      %p158 = pnand %p156, %p157
      %p159 = pneg %p158
      // Predicated region
      $region25: #{tpu_custom_call.1} parent=5 // pred_check
        _
      $region26: #{tpu_custom_call.1} parent=5 // pred_check_branch
        %161 = sbr.rel (%p158) target = $region28
      $region27: #{tpu_custom_call.1} parent=5 // pred_region
        %s162 = ssub.s32 %s13, 1
        %s163 = sand.u32 %s40, 1
        %s164 = scalar_lea.sflag [#allocation3], %s163
        %s165 = sand.u32 %s40, 1
        %s166 = smul.addr %s165, 256
        %s167 = scalar_lea.vmem [#allocation2], %s166
        // Predicated region
        $region29: #{tpu_custom_call.1} parent=27 // pred_check
          %p168 = pneg %p53
        $region30: #{tpu_custom_call.1} parent=27 // pred_check_branch
          %170 = sbr.rel (%p168) target = $region32
        $region31: #{tpu_custom_call.1} parent=27 // pred_region
          %171 = dma.done %s164, 4096
        $region32: #{tpu_custom_call.1} parent=27 // pred_fallthru
          _
        // Predicated region
        $region33: #{tpu_custom_call.1} parent=27 // pred_check
          %p172 = pneg %p74
        $region34: #{tpu_custom_call.1} parent=27 // pred_check_branch
          %174 = sbr.rel (%p172) target = $region36
        $region35: #{tpu_custom_call.1} parent=27 // pred_region
          %175 = dma.done [#allocation6], 6144
        $region36: #{tpu_custom_call.1} parent=27 // pred_fallthru
          _
        %s176 = sand.u32 %s40, 1
        %s177 = scalar_lea.sflag [#allocation3], %s176
        %s178 = sand.u32 %s40, 1
        %s179 = smul.addr %s178, 256
        %s180 = scalar_lea.vmem [#allocation2], %s179
        %p181 = pneg %p53
        %p182 = pneg %p50
        %p183 = pneg %p74
        %p184 = pneg %p71
        %p185 = pneg %p100
        %p186 = pneg %p97
        %s187 = smul.u32 32, %s22
        %s188 = smul.u32 32, %s22
        %s190 = smul.u32 %s23, 32
        %s191 = smul.addr %s190, 4
        %s192 = scalar_lea.vmem [#allocation5], %s191
        %v193 = vld [vmem:[%s192] sm:$0xf]
        %v194 = vld [vmem:[%s192 + $0x4] sm:$0xf]
        %v195 = vld [vmem:[%s192 + $0x8] sm:$0xf]
        %v196 = vld [vmem:[%s192 + $0xc] sm:$0xf]
        %v197 = vld [vmem:[%s192 + $0x10] sm:$0xf]
        %v198 = vld [vmem:[%s192 + $0x14] sm:$0xf]
        %v199 = vld [vmem:[%s192 + $0x18] sm:$0xf]
        %v200 = vld [vmem:[%s192 + $0x1c] sm:$0xf]
        %v201 = vld [vmem:[%s192 + $0x20] sm:$0xf]
        %v202 = vld [vmem:[%s192 + $0x24] sm:$0xf]
        %v203 = vld [vmem:[%s192 + $0x28] sm:$0xf]
        %v204 = vld [vmem:[%s192 + $0x2c] sm:$0xf]
        %v205 = vld [vmem:[%s192 + $0x30] sm:$0xf]
        %v206 = vld [vmem:[%s192 + $0x34] sm:$0xf]
        %v207 = vld [vmem:[%s192 + $0x38] sm:$0xf]
        %v208 = vld [vmem:[%s192 + $0x3c] sm:$0xf]
        %v209 = vld [vmem:[%s192 + $0x40] sm:$0xf]
        %v210 = vld [vmem:[%s192 + $0x44] sm:$0xf]
        %v211 = vld [vmem:[%s192 + $0x48] sm:$0xf]
        %v212 = vld [vmem:[%s192 + $0x4c] sm:$0xf]
        %v213 = vld [vmem:[%s192 + $0x50] sm:$0xf]
        %v214 = vld [vmem:[%s192 + $0x54] sm:$0xf]
        %v215 = vld [vmem:[%s192 + $0x58] sm:$0xf]
        %v216 = vld [vmem:[%s192 + $0x5c] sm:$0xf]
        %v217 = vld [vmem:[%s192 + $0x60] sm:$0xf]
        %v218 = vld [vmem:[%s192 + $0x64] sm:$0xf]
        %v219 = vld [vmem:[%s192 + $0x68] sm:$0xf]
        %v220 = vld [vmem:[%s192 + $0x6c] sm:$0xf]
        %v221 = vld [vmem:[%s192 + $0x70] sm:$0xf]
        %v222 = vld [vmem:[%s192 + $0x74] sm:$0xf]
        %v223 = vld [vmem:[%s192 + $0x78] sm:$0xf]
        %v224 = vld [vmem:[%s192 + $0x7c] sm:$0xf]
        %v225 = vld [vmem:[%s167] sm:$0xff]
        %v226 = vld [vmem:[%s167 + $0x8] sm:$0xff]
        %v227 = vld [vmem:[%s167 + $0x10] sm:$0xff]
        %v228 = vld [vmem:[%s167 + $0x18] sm:$0xff]
        %v229 = vld [vmem:[%s167 + $0x20] sm:$0xff]
        %v230 = vld [vmem:[%s167 + $0x28] sm:$0xff]
        %v231 = vld [vmem:[%s167 + $0x30] sm:$0xff]
        %v232 = vld [vmem:[%s167 + $0x38] sm:$0xff]
        %v233 = vld [vmem:[%s167 + $0x40] sm:$0xff]
        %v234 = vld [vmem:[%s167 + $0x48] sm:$0xff]
        %v235 = vld [vmem:[%s167 + $0x50] sm:$0xff]
        %v236 = vld [vmem:[%s167 + $0x58] sm:$0xff]
        %v237 = vld [vmem:[%s167 + $0x60] sm:$0xff]
        %v238 = vld [vmem:[%s167 + $0x68] sm:$0xff]
        %v239 = vld [vmem:[%s167 + $0x70] sm:$0xff]
        %v240 = vld [vmem:[%s167 + $0x78] sm:$0xff]
        %v241 = vld [vmem:[%s167 + $0x80] sm:$0xff]
        %v242 = vld [vmem:[%s167 + $0x88] sm:$0xff]
        %v243 = vld [vmem:[%s167 + $0x90] sm:$0xff]
        %v244 = vld [vmem:[%s167 + $0x98] sm:$0xff]
        %v245 = vld [vmem:[%s167 + $0xa0] sm:$0xff]
        %v246 = vld [vmem:[%s167 + $0xa8] sm:$0xff]
        %v247 = vld [vmem:[%s167 + $0xb0] sm:$0xff]
        %v248 = vld [vmem:[%s167 + $0xb8] sm:$0xff]
        %v249 = vld [vmem:[%s167 + $0xc0] sm:$0xff]
        %v250 = vld [vmem:[%s167 + $0xc8] sm:$0xff]
        %v251 = vld [vmem:[%s167 + $0xd0] sm:$0xff]
        %v252 = vld [vmem:[%s167 + $0xd8] sm:$0xff]
        %v253 = vld [vmem:[%s167 + $0xe0] sm:$0xff]
        %v254 = vld [vmem:[%s167 + $0xe8] sm:$0xff]
        %v255 = vld [vmem:[%s167 + $0xf0] sm:$0xff]
        %v256 = vld [vmem:[%s167 + $0xf8] sm:$0xff]
        %v289 = vunpack.c.l.b16 %v225
        %v290 = vunpack.c.h.b16 %v225
        %v291 = vunpack.c.l.b16 %v226
        %v292 = vunpack.c.h.b16 %v226
        %v293 = vunpack.c.l.b16 %v227
        %v294 = vunpack.c.h.b16 %v227
        %v295 = vunpack.c.l.b16 %v228
        %v296 = vunpack.c.h.b16 %v228
        %v297 = vunpack.c.l.b16 %v229
        %v298 = vunpack.c.h.b16 %v229
        %v299 = vunpack.c.l.b16 %v230
        %v300 = vunpack.c.h.b16 %v230
        %v301 = vunpack.c.l.b16 %v231
        %v302 = vunpack.c.h.b16 %v231
        %v303 = vunpack.c.l.b16 %v232
        %v304 = vunpack.c.h.b16 %v232
        %v305 = vunpack.c.l.b16 %v233
        %v306 = vunpack.c.h.b16 %v233
        %v307 = vunpack.c.l.b16 %v234
        %v308 = vunpack.c.h.b16 %v234
        %v309 = vunpack.c.l.b16 %v235
        %v310 = vunpack.c.h.b16 %v235
        %v311 = vunpack.c.l.b16 %v236
        %v312 = vunpack.c.h.b16 %v236
        %v313 = vunpack.c.l.b16 %v237
        %v314 = vunpack.c.h.b16 %v237
        %v315 = vunpack.c.l.b16 %v238
        %v316 = vunpack.c.h.b16 %v238
        %v317 = vunpack.c.l.b16 %v239
        %v318 = vunpack.c.h.b16 %v239
        %v319 = vunpack.c.l.b16 %v240
        %v320 = vunpack.c.h.b16 %v240
        %v321 = vunpack.c.l.b16 %v241
        %v322 = vunpack.c.h.b16 %v241
        %v323 = vunpack.c.l.b16 %v242
        %v324 = vunpack.c.h.b16 %v242
        %v325 = vunpack.c.l.b16 %v243
        %v326 = vunpack.c.h.b16 %v243
        %v327 = vunpack.c.l.b16 %v244
        %v328 = vunpack.c.h.b16 %v244
        %v329 = vunpack.c.l.b16 %v245
        %v330 = vunpack.c.h.b16 %v245
        %v331 = vunpack.c.l.b16 %v246
        %v332 = vunpack.c.h.b16 %v246
        %v333 = vunpack.c.l.b16 %v247
        %v334 = vunpack.c.h.b16 %v247
        %v335 = vunpack.c.l.b16 %v248
        %v336 = vunpack.c.h.b16 %v248
        %v337 = vunpack.c.l.b16 %v249
        %v338 = vunpack.c.h.b16 %v249
        %v339 = vunpack.c.l.b16 %v250
        %v340 = vunpack.c.h.b16 %v250
        %v341 = vunpack.c.l.b16 %v251
        %v342 = vunpack.c.h.b16 %v251
        %v343 = vunpack.c.l.b16 %v252
        %v344 = vunpack.c.h.b16 %v252
        %v345 = vunpack.c.l.b16 %v253
        %v346 = vunpack.c.h.b16 %v253
        %v347 = vunpack.c.l.b16 %v254
        %v348 = vunpack.c.h.b16 %v254
        %v349 = vunpack.c.l.b16 %v255
        %v350 = vunpack.c.h.b16 %v255
        %v351 = vunpack.c.l.b16 %v256
        %v352 = vunpack.c.h.b16 %v256
        %v353 = vpack.c.b16 %v291, %v289
        %v354 = vpack.c.b16 %v292, %v290
        %v355 = vpack.c.b16 %v295, %v293
        %v356 = vpack.c.b16 %v296, %v294
        %v357 = vpack.c.b16 %v299, %v297
        %v358 = vpack.c.b16 %v300, %v298
        %v359 = vpack.c.b16 %v303, %v301
        %v360 = vpack.c.b16 %v304, %v302
        %v361 = vpack.c.b16 %v307, %v305
        %v362 = vpack.c.b16 %v308, %v306
        %v363 = vpack.c.b16 %v311, %v309
        %v364 = vpack.c.b16 %v312, %v310
        %v365 = vpack.c.b16 %v315, %v313
        %v366 = vpack.c.b16 %v316, %v314
        %v367 = vpack.c.b16 %v319, %v317
        %v368 = vpack.c.b16 %v320, %v318
        %v369 = vpack.c.b16 %v323, %v321
        %v370 = vpack.c.b16 %v324, %v322
        %v371 = vpack.c.b16 %v327, %v325
        %v372 = vpack.c.b16 %v328, %v326
        %v373 = vpack.c.b16 %v331, %v329
        %v374 = vpack.c.b16 %v332, %v330
        %v375 = vpack.c.b16 %v335, %v333
        %v376 = vpack.c.b16 %v336, %v334
        %v377 = vpack.c.b16 %v339, %v337
        %v378 = vpack.c.b16 %v340, %v338
        %v379 = vpack.c.b16 %v343, %v341
        %v380 = vpack.c.b16 %v344, %v342
        %v381 = vpack.c.b16 %v347, %v345
        %v382 = vpack.c.b16 %v348, %v346
        %v383 = vpack.c.b16 %v351, %v349
        %v384 = vpack.c.b16 %v352, %v350
        %v449 = vunpack.c.l.b16 %v193
        %v450 = vunpack.c.l.b16 %v194
        %v451 = vunpack.c.l.b16 %v195
        %v452 = vunpack.c.l.b16 %v196
        %v453 = vunpack.c.l.b16 %v197
        %v454 = vunpack.c.l.b16 %v198
        %v455 = vunpack.c.l.b16 %v199
        %v456 = vunpack.c.l.b16 %v200
        %v457 = vunpack.c.l.b16 %v201
        %v458 = vunpack.c.l.b16 %v202
        %v459 = vunpack.c.l.b16 %v203
        %v460 = vunpack.c.l.b16 %v204
        %v461 = vunpack.c.l.b16 %v205
        %v462 = vunpack.c.l.b16 %v206
        %v463 = vunpack.c.l.b16 %v207
        %v464 = vunpack.c.l.b16 %v208
        %v465 = vunpack.c.l.b16 %v209
        %v466 = vunpack.c.l.b16 %v210
        %v467 = vunpack.c.l.b16 %v211
        %v468 = vunpack.c.l.b16 %v212
        %v469 = vunpack.c.l.b16 %v213
        %v470 = vunpack.c.l.b16 %v214
        %v471 = vunpack.c.l.b16 %v215
        %v472 = vunpack.c.l.b16 %v216
        %v473 = vunpack.c.l.b16 %v217
        %v474 = vunpack.c.l.b16 %v218
        %v475 = vunpack.c.l.b16 %v219
        %v476 = vunpack.c.l.b16 %v220
        %v477 = vunpack.c.l.b16 %v221
        %v478 = vunpack.c.l.b16 %v222
        %v479 = vunpack.c.l.b16 %v223
        %v480 = vunpack.c.l.b16 %v224
        %v481 = vpack.c.b16 %v450, %v449
        %v482 = vpack.c.b16 %v452, %v451
        %v483 = vpack.c.b16 %v454, %v453
        %v484 = vpack.c.b16 %v456, %v455
        %v485 = vpack.c.b16 %v458, %v457
        %v486 = vpack.c.b16 %v460, %v459
        %v487 = vpack.c.b16 %v462, %v461
        %v488 = vpack.c.b16 %v464, %v463
        %v489 = vpack.c.b16 %v466, %v465
        %v490 = vpack.c.b16 %v468, %v467
        %v491 = vpack.c.b16 %v470, %v469
        %v492 = vpack.c.b16 %v472, %v471
        %v493 = vpack.c.b16 %v474, %v473
        %v494 = vpack.c.b16 %v476, %v475
        %v495 = vpack.c.b16 %v478, %v477
        %v496 = vpack.c.b16 %v480, %v479
        %513 = vmatprep.subr.bf16.mxu0 0
        %514 = vmatpush1.bf16.msra.mxu0 %v481
        %515 = vmatprep.subr.bf16.mxu0 0
        %516 = vmatpush1.bf16.msra.mxu0 %v482
        %517 = vmatprep.subr.bf16.mxu0 0
        %518 = vmatpush1.bf16.msra.mxu0 %v483
        %519 = vmatprep.subr.bf16.mxu0 0
        %520 = vmatpush1.bf16.msra.mxu0 %v484
        %521 = vmatprep.subr.bf16.mxu0 0
        %522 = vmatpush1.bf16.msra.mxu0 %v485
        %523 = vmatprep.subr.bf16.mxu0 0
        %524 = vmatpush1.bf16.msra.mxu0 %v486
        %525 = vmatprep.subr.bf16.mxu0 0
        %526 = vmatpush1.bf16.msra.mxu0 %v487
        %527 = vmatprep.subr.bf16.mxu0 0
        %528 = vmatpush1.bf16.msra.mxu0 %v488
        %529 = vmatprep.subr.bf16.mxu0 0
        %530 = vmatpush1.bf16.msra.mxu0 %v489
        %531 = vmatprep.subr.bf16.mxu0 0
        %532 = vmatpush1.bf16.msra.mxu0 %v490
        %533 = vmatprep.subr.bf16.mxu0 0
        %534 = vmatpush1.bf16.msra.mxu0 %v491
        %535 = vmatprep.subr.bf16.mxu0 0
        %536 = vmatpush1.bf16.msra.mxu0 %v492
        %537 = vmatprep.subr.bf16.mxu0 0
        %538 = vmatpush1.bf16.msra.mxu0 %v493
        %539 = vmatprep.subr.bf16.mxu0 0
        %540 = vmatpush1.bf16.msra.mxu0 %v494
        %541 = vmatprep.subr.bf16.mxu0 0
        %542 = vmatpush1.bf16.msra.mxu0 %v495
        %543 = vmatprep.subr.bf16.mxu0 0
        %544 = vmatpush1.bf16.msra.mxu0 %v496
        %545 = vmatprep.mubr.bf16.mxu0 %v354
        %546 = vmatmul.mubr.bf16.gmra.mrb[0].mxu0 %v353
        %v547 = vpop.f32.mrb[0].mxu0
        %v548 = vadd.f32 0.0, %v547
        %v549 = vpop.f32.mrb[0].mxu0
        %v550 = vpop.f32.mrb[0].mxu0
        %v551 = vadd.f32 0.0, %v550
        %v552 = vpop.f32.mrb[0].mxu0
        %553 = vmatprep.mubr.bf16.mxu0 %v356
        %554 = vmatmul.mubr.bf16.gmra.mrb[0].mxu0 %v355
        %v555 = vpop.f32.mrb[0].mxu0
        %v556 = vadd.f32 0.0, %v555
        %v557 = vpop.f32.mrb[0].mxu0
        %v558 = vpop.f32.mrb[0].mxu0
        %v559 = vadd.f32 0.0, %v558
        %v560 = vpop.f32.mrb[0].mxu0
        %561 = vmatprep.mubr.bf16.mxu0 %v358
        %562 = vmatmul.mubr.bf16.gmra.mrb[0].mxu0 %v357
        %v563 = vpop.f32.mrb[0].mxu0
        %v564 = vadd.f32 0.0, %v563
        %v565 = vpop.f32.mrb[0].mxu0
        %v566 = vpop.f32.mrb[0].mxu0
        %v567 = vadd.f32 0.0, %v566
        %v568 = vpop.f32.mrb[0].mxu0
        %569 = vmatprep.mubr.bf16.mxu0 %v360
        %570 = vmatmul.mubr.bf16.gmra.mrb[0].mxu0 %v359
        %v571 = vpop.f32.mrb[0].mxu0
        %v572 = vadd.f32 0.0, %v571
        %v573 = vpop.f32.mrb[0].mxu0
        %v574 = vpop.f32.mrb[0].mxu0
        %v575 = vadd.f32 0.0, %v574
        %v576 = vpop.f32.mrb[0].mxu0
        %577 = vmatprep.mubr.bf16.mxu0 %v362
        %578 = vmatmul.mubr.bf16.gmra.mrb[0].mxu0 %v361
        %v579 = vpop.f32.mrb[0].mxu0
        %v580 = vadd.f32 0.0, %v579
        %v581 = vpop.f32.mrb[0].mxu0
        %v582 = vpop.f32.mrb[0].mxu0
        %v583 = vadd.f32 0.0, %v582
        %v584 = vpop.f32.mrb[0].mxu0
        %585 = vmatprep.mubr.bf16.mxu0 %v364
        %586 = vmatmul.mubr.bf16.gmra.mrb[0].mxu0 %v363
        %v587 = vpop.f32.mrb[0].mxu0
        %v588 = vadd.f32 0.0, %v587
        %v589 = vpop.f32.mrb[0].mxu0
        %v590 = vpop.f32.mrb[0].mxu0
        %v591 = vadd.f32 0.0, %v590
        %v592 = vpop.f32.mrb[0].mxu0
        %593 = vmatprep.mubr.bf16.mxu0 %v366
        %594 = vmatmul.mubr.bf16.gmra.mrb[0].mxu0 %v365
        %v595 = vpop.f32.mrb[0].mxu0
        %v596 = vadd.f32 0.0, %v595
        %v597 = vpop.f32.mrb[0].mxu0
        %v598 = vpop.f32.mrb[0].mxu0
        %v599 = vadd.f32 0.0, %v598
        %v600 = vpop.f32.mrb[0].mxu0
        %601 = vmatprep.mubr.bf16.mxu0 %v368
        %602 = vmatmul.mubr.bf16.gmra.mrb[0].mxu0 %v367
        %v603 = vpop.f32.mrb[0].mxu0
        %v604 = vadd.f32 0.0, %v603
        %v605 = vpop.f32.mrb[0].mxu0
        %v606 = vpop.f32.mrb[0].mxu0
        %v607 = vadd.f32 0.0, %v606
        %v608 = vpop.f32.mrb[0].mxu0
        %609 = vmatprep.mubr.bf16.mxu0 %v370
        %610 = vmatmul.mubr.bf16.gmra.mrb[0].mxu0 %v369
        %v611 = vpop.f32.mrb[0].mxu0
        %v612 = vadd.f32 0.0, %v611
        %v613 = vpop.f32.mrb[0].mxu0
        %v614 = vpop.f32.mrb[0].mxu0
        %v615 = vadd.f32 0.0, %v614
        %v616 = vpop.f32.mrb[0].mxu0
        %617 = vmatprep.mubr.bf16.mxu0 %v372
        %618 = vmatmul.mubr.bf16.gmra.mrb[0].mxu0 %v371
        %v619 = vpop.f32.mrb[0].mxu0
        %v620 = vadd.f32 0.0, %v619
        %v621 = vpop.f32.mrb[0].mxu0
        %v622 = vpop.f32.mrb[0].mxu0
        %v623 = vadd.f32 0.0, %v622
        %v624 = vpop.f32.mrb[0].mxu0
        %625 = vmatprep.mubr.bf16.mxu0 %v374
        %626 = vmatmul.mubr.bf16.gmra.mrb[0].mxu0 %v373
        %v627 = vpop.f32.mrb[0].mxu0
        %v628 = vadd.f32 0.0, %v627
        %v629 = vpop.f32.mrb[0].mxu0
        %v630 = vpop.f32.mrb[0].mxu0
        %v631 = vadd.f32 0.0, %v630
        %v632 = vpop.f32.mrb[0].mxu0
        %633 = vmatprep.mubr.bf16.mxu0 %v376
        %634 = vmatmul.mubr.bf16.gmra.mrb[0].mxu0 %v375
        %v635 = vpop.f32.mrb[0].mxu0
        %v636 = vadd.f32 0.0, %v635
        %v637 = vpop.f32.mrb[0].mxu0
        %v638 = vpop.f32.mrb[0].mxu0
        %v639 = vadd.f32 0.0, %v638
        %v640 = vpop.f32.mrb[0].mxu0
        %641 = vmatprep.mubr.bf16.mxu0 %v378
        %642 = vmatmul.mubr.bf16.gmra.mrb[0].mxu0 %v377
        %v643 = vpop.f32.mrb[0].mxu0
        %v644 = vadd.f32 0.0, %v643
        %v645 = vpop.f32.mrb[0].mxu0
        %v646 = vpop.f32.mrb[0].mxu0
        %v647 = vadd.f32 0.0, %v646
        %v648 = vpop.f32.mrb[0].mxu0
        %649 = vmatprep.mubr.bf16.mxu0 %v380
        %650 = vmatmul.mubr.bf16.gmra.mrb[0].mxu0 %v379
        %v651 = vpop.f32.mrb[0].mxu0
        %v652 = vadd.f32 0.0, %v651
        %v653 = vpop.f32.mrb[0].mxu0
        %v654 = vpop.f32.mrb[0].mxu0
        %v655 = vadd.f32 0.0, %v654
        %v656 = vpop.f32.mrb[0].mxu0
        %657 = vmatprep.mubr.bf16.mxu0 %v382
        %658 = vmatmul.mubr.bf16.gmra.mrb[0].mxu0 %v381
        %v659 = vpop.f32.mrb[0].mxu0
        %v660 = vadd.f32 0.0, %v659
        %v661 = vpop.f32.mrb[0].mxu0
        %v662 = vpop.f32.mrb[0].mxu0
        %v663 = vadd.f32 0.0, %v662
        %v664 = vpop.f32.mrb[0].mxu0
        %665 = vmatprep.mubr.bf16.mxu0 %v384
        %666 = vmatmul.mubr.bf16.gmra.mrb[0].mxu0 %v383
        %v667 = vpop.f32.mrb[0].mxu0
        %v668 = vadd.f32 0.0, %v667
        %v669 = vpop.f32.mrb[0].mxu0
        %v670 = vpop.f32.mrb[0].mxu0
        %v671 = vadd.f32 0.0, %v670
        %v672 = vpop.f32.mrb[0].mxu0
        %673 = vdwg.mxu0
        %v674 = vmax.f32 %v548, 0.0
        %v675 = vmax.f32 %v551, 0.0
        %v676 = vmax.f32 %v556, 0.0
        %v677 = vmax.f32 %v559, 0.0
        %v678 = vmax.f32 %v564, 0.0
        %v679 = vmax.f32 %v567, 0.0
        %v680 = vmax.f32 %v572, 0.0
        %v681 = vmax.f32 %v575, 0.0
        %v682 = vmax.f32 %v580, 0.0
        %v683 = vmax.f32 %v583, 0.0
        %v684 = vmax.f32 %v588, 0.0
        %v685 = vmax.f32 %v591, 0.0
        %v686 = vmax.f32 %v596, 0.0
        %v687 = vmax.f32 %v599, 0.0
        %v688 = vmax.f32 %v604, 0.0
        %v689 = vmax.f32 %v607, 0.0
        %v690 = vmax.f32 %v612, 0.0
        %v691 = vmax.f32 %v615, 0.0
        %v692 = vmax.f32 %v620, 0.0
        %v693 = vmax.f32 %v623, 0.0
        %v694 = vmax.f32 %v628, 0.0
        %v695 = vmax.f32 %v631, 0.0
        %v696 = vmax.f32 %v636, 0.0
        %v697 = vmax.f32 %v639, 0.0
        %v698 = vmax.f32 %v644, 0.0
        %v699 = vmax.f32 %v647, 0.0
        %v700 = vmax.f32 %v652, 0.0
        %v701 = vmax.f32 %v655, 0.0
        %v702 = vmax.f32 %v660, 0.0
        %v703 = vmax.f32 %v663, 0.0
        %v704 = vmax.f32 %v668, 0.0
        %v705 = vmax.f32 %v671, 0.0
        %p706 = scmp.eq.s32.totalorder %s23, 0
        // Predicated region
        $region37: #{tpu_custom_call.1} parent=27 // pred_check
          %p707 = pneg %p706
        $region38: #{tpu_custom_call.1} parent=27 // pred_check_branch
          %709 = sbr.rel (%p707) target = $region40
        $region39: #{tpu_custom_call.1} parent=27 // pred_region
          %710 = vst [vmem:[#allocation7] sm:$0xff] %v674
          %711 = vst [vmem:[#allocation7 + $0x8] sm:$0xff] %v675
          %712 = vst [vmem:[#allocation7 + $0x10] sm:$0xff] %v676
          %713 = vst [vmem:[#allocation7 + $0x18] sm:$0xff] %v677
          %714 = vst [vmem:[#allocation7 + $0x20] sm:$0xff] %v678
          %715 = vst [vmem:[#allocation7 + $0x28] sm:$0xff] %v679
          %716 = vst [vmem:[#allocation7 + $0x30] sm:$0xff] %v680
          %717 = vst [vmem:[#allocation7 + $0x38] sm:$0xff] %v681
          %718 = vst [vmem:[#allocation7 + $0x40] sm:$0xff] %v682
          %719 = vst [vmem:[#allocation7 + $0x48] sm:$0xff] %v683
          %720 = vst [vmem:[#allocation7 + $0x50] sm:$0xff] %v684
          %721 = vst [vmem:[#allocation7 + $0x58] sm:$0xff] %v685
          %722 = vst [vmem:[#allocation7 + $0x60] sm:$0xff] %v686
          %723 = vst [vmem:[#allocation7 + $0x68] sm:$0xff] %v687
          %724 = vst [vmem:[#allocation7 + $0x70] sm:$0xff] %v688
          %725 = vst [vmem:[#allocation7 + $0x78] sm:$0xff] %v689
          %726 = vst [vmem:[#allocation7 + $0x80] sm:$0xff] %v690
          %727 = vst [vmem:[#allocation7 + $0x88] sm:$0xff] %v691
          %728 = vst [vmem:[#allocation7 + $0x90] sm:$0xff] %v692
          %729 = vst [vmem:[#allocation7 + $0x98] sm:$0xff] %v693
          %730 = vst [vmem:[#allocation7 + $0xa0] sm:$0xff] %v694
          %731 = vst [vmem:[#allocation7 + $0xa8] sm:$0xff] %v695
          %732 = vst [vmem:[#allocation7 + $0xb0] sm:$0xff] %v696
          %733 = vst [vmem:[#allocation7 + $0xb8] sm:$0xff] %v697
          %734 = vst [vmem:[#allocation7 + $0xc0] sm:$0xff] %v698
          %735 = vst [vmem:[#allocation7 + $0xc8] sm:$0xff] %v699
          %736 = vst [vmem:[#allocation7 + $0xd0] sm:$0xff] %v700
          %737 = vst [vmem:[#allocation7 + $0xd8] sm:$0xff] %v701
          %738 = vst [vmem:[#allocation7 + $0xe0] sm:$0xff] %v702
          %739 = vst [vmem:[#allocation7 + $0xe8] sm:$0xff] %v703
          %740 = vst [vmem:[#allocation7 + $0xf0] sm:$0xff] %v704
          %741 = vst [vmem:[#allocation7 + $0xf8] sm:$0xff] %v705
        $region40: #{tpu_custom_call.1} parent=27 // pred_fallthru
          _
        %p742 = scmp.gt.s32.totalorder %s23, 0
        // Predicated region
        $region41: #{tpu_custom_call.1} parent=27 // pred_check
          %p743 = pneg %p742
        $region42: #{tpu_custom_call.1} parent=27 // pred_check_branch
          %745 = sbr.rel (%p743) target = $region44
        $region43: #{tpu_custom_call.1} parent=27 // pred_region
          %v746 = vld [vmem:[#allocation7] sm:$0xff]
          %v747 = vld [vmem:[#allocation7 + $0x8] sm:$0xff]
          %v748 = vld [vmem:[#allocation7 + $0x10] sm:$0xff]
          %v749 = vld [vmem:[#allocation7 + $0x18] sm:$0xff]
          %v750 = vld [vmem:[#allocation7 + $0x20] sm:$0xff]
          %v751 = vld [vmem:[#allocation7 + $0x28] sm:$0xff]
          %v752 = vld [vmem:[#allocation7 + $0x30] sm:$0xff]
          %v753 = vld [vmem:[#allocation7 + $0x38] sm:$0xff]
          %v754 = vld [vmem:[#allocation7 + $0x40] sm:$0xff]
          %v755 = vld [vmem:[#allocation7 + $0x48] sm:$0xff]
          %v756 = vld [vmem:[#allocation7 + $0x50] sm:$0xff]
          %v757 = vld [vmem:[#allocation7 + $0x58] sm:$0xff]
          %v758 = vld [vmem:[#allocation7 + $0x60] sm:$0xff]
          %v759 = vld [vmem:[#allocation7 + $0x68] sm:$0xff]
          %v760 = vld [vmem:[#allocation7 + $0x70] sm:$0xff]
          %v761 = vld [vmem:[#allocation7 + $0x78] sm:$0xff]
          %v762 = vld [vmem:[#allocation7 + $0x80] sm:$0xff]
          %v763 = vld [vmem:[#allocation7 + $0x88] sm:$0xff]
          %v764 = vld [vmem:[#allocation7 + $0x90] sm:$0xff]
          %v765 = vld [vmem:[#allocation7 + $0x98] sm:$0xff]
          %v766 = vld [vmem:[#allocation7 + $0xa0] sm:$0xff]
          %v767 = vld [vmem:[#allocation7 + $0xa8] sm:$0xff]
          %v768 = vld [vmem:[#allocation7 + $0xb0] sm:$0xff]
          %v769 = vld [vmem:[#allocation7 + $0xb8] sm:$0xff]
          %v770 = vld [vmem:[#allocation7 + $0xc0] sm:$0xff]
          %v771 = vld [vmem:[#allocation7 + $0xc8] sm:$0xff]
          %v772 = vld [vmem:[#allocation7 + $0xd0] sm:$0xff]
          %v773 = vld [vmem:[#allocation7 + $0xd8] sm:$0xff]
          %v774 = vld [vmem:[#allocation7 + $0xe0] sm:$0xff]
          %v775 = vld [vmem:[#allocation7 + $0xe8] sm:$0xff]
          %v776 = vld [vmem:[#allocation7 + $0xf0] sm:$0xff]
          %v777 = vld [vmem:[#allocation7 + $0xf8] sm:$0xff]
          %v778 = vadd.f32 %v746, %v674
          %v779 = vadd.f32 %v747, %v675
          %v780 = vadd.f32 %v748, %v676
          %v781 = vadd.f32 %v749, %v677
          %v782 = vadd.f32 %v750, %v678
          %v783 = vadd.f32 %v751, %v679
          %v784 = vadd.f32 %v752, %v680
          %v785 = vadd.f32 %v753, %v681
          %v786 = vadd.f32 %v754, %v682
          %v787 = vadd.f32 %v755, %v683
          %v788 = vadd.f32 %v756, %v684
          %v789 = vadd.f32 %v757, %v685
          %v790 = vadd.f32 %v758, %v686
          %v791 = vadd.f32 %v759, %v687
          %v792 = vadd.f32 %v760, %v688
          %v793 = vadd.f32 %v761, %v689
          %v794 = vadd.f32 %v762, %v690
          %v795 = vadd.f32 %v763, %v691
          %v796 = vadd.f32 %v764, %v692
          %v797 = vadd.f32 %v765, %v693
          %v798 = vadd.f32 %v766, %v694
          %v799 = vadd.f32 %v767, %v695
          %v800 = vadd.f32 %v768, %v696
          %v801 = vadd.f32 %v769, %v697
          %v802 = vadd.f32 %v770, %v698
          %v803 = vadd.f32 %v771, %v699
          %v804 = vadd.f32 %v772, %v700
          %v805 = vadd.f32 %v773, %v701
          %v806 = vadd.f32 %v774, %v702
          %v807 = vadd.f32 %v775, %v703
          %v808 = vadd.f32 %v776, %v704
          %v809 = vadd.f32 %v777, %v705
          %810 = vst [vmem:[#allocation7] sm:$0xff] %v778
          %811 = vst [vmem:[#allocation7 + $0x8] sm:$0xff] %v779
          %812 = vst [vmem:[#allocation7 + $0x10] sm:$0xff] %v780
          %813 = vst [vmem:[#allocation7 + $0x18] sm:$0xff] %v781
          %814 = vst [vmem:[#allocation7 + $0x20] sm:$0xff] %v782
          %815 = vst [vmem:[#allocation7 + $0x28] sm:$0xff] %v783
          %816 = vst [vmem:[#allocation7 + $0x30] sm:$0xff] %v784
          %817 = vst [vmem:[#allocation7 + $0x38] sm:$0xff] %v785
          %818 = vst [vmem:[#allocation7 + $0x40] sm:$0xff] %v786
          %819 = vst [vmem:[#allocation7 + $0x48] sm:$0xff] %v787
          %820 = vst [vmem:[#allocation7 + $0x50] sm:$0xff] %v788
          %821 = vst [vmem:[#allocation7 + $0x58] sm:$0xff] %v789
          %822 = vst [vmem:[#allocation7 + $0x60] sm:$0xff] %v790
          %823 = vst [vmem:[#allocation7 + $0x68] sm:$0xff] %v791
          %824 = vst [vmem:[#allocation7 + $0x70] sm:$0xff] %v792
          %825 = vst [vmem:[#allocation7 + $0x78] sm:$0xff] %v793
          %826 = vst [vmem:[#allocation7 + $0x80] sm:$0xff] %v794
          %827 = vst [vmem:[#allocation7 + $0x88] sm:$0xff] %v795
          %828 = vst [vmem:[#allocation7 + $0x90] sm:$0xff] %v796
          %829 = vst [vmem:[#allocation7 + $0x98] sm:$0xff] %v797
          %830 = vst [vmem:[#allocation7 + $0xa0] sm:$0xff] %v798
          %831 = vst [vmem:[#allocation7 + $0xa8] sm:$0xff] %v799
          %832 = vst [vmem:[#allocation7 + $0xb0] sm:$0xff] %v800
          %833 = vst [vmem:[#allocation7 + $0xb8] sm:$0xff] %v801
          %834 = vst [vmem:[#allocation7 + $0xc0] sm:$0xff] %v802
          %835 = vst [vmem:[#allocation7 + $0xc8] sm:$0xff] %v803
          %836 = vst [vmem:[#allocation7 + $0xd0] sm:$0xff] %v804
          %837 = vst [vmem:[#allocation7 + $0xd8] sm:$0xff] %v805
          %838 = vst [vmem:[#allocation7 + $0xe0] sm:$0xff] %v806
          %839 = vst [vmem:[#allocation7 + $0xe8] sm:$0xff] %v807
          %840 = vst [vmem:[#allocation7 + $0xf0] sm:$0xff] %v808
          %841 = vst [vmem:[#allocation7 + $0xf8] sm:$0xff] %v809
        $region44: #{tpu_custom_call.1} parent=27 // pred_fallthru
          _
        %p842 = scmp.eq.s32.totalorder %s23, 2
        // Predicated region
        $region45: #{tpu_custom_call.1} parent=27 // pred_check
          %p843 = pneg %p842
        $region46: #{tpu_custom_call.1} parent=27 // pred_check_branch
          %845 = sbr.rel (%p843) target = $region48
        $region47: #{tpu_custom_call.1} parent=27 // pred_region
          %v846 = vld [vmem:[#allocation7] sm:$0xff]
          %v847 = vld [vmem:[#allocation7 + $0x8] sm:$0xff]
          %v848 = vld [vmem:[#allocation7 + $0x10] sm:$0xff]
          %v849 = vld [vmem:[#allocation7 + $0x18] sm:$0xff]
          %v850 = vld [vmem:[#allocation7 + $0x20] sm:$0xff]
          %v851 = vld [vmem:[#allocation7 + $0x28] sm:$0xff]
          %v852 = vld [vmem:[#allocation7 + $0x30] sm:$0xff]
          %v853 = vld [vmem:[#allocation7 + $0x38] sm:$0xff]
          %v854 = vld [vmem:[#allocation7 + $0x40] sm:$0xff]
          %v855 = vld [vmem:[#allocation7 + $0x48] sm:$0xff]
          %v856 = vld [vmem:[#allocation7 + $0x50] sm:$0xff]
          %v857 = vld [vmem:[#allocation7 + $0x58] sm:$0xff]
          %v858 = vld [vmem:[#allocation7 + $0x60] sm:$0xff]
          %v859 = vld [vmem:[#allocation7 + $0x68] sm:$0xff]
          %v860 = vld [vmem:[#allocation7 + $0x70] sm:$0xff]
          %v861 = vld [vmem:[#allocation7 + $0x78] sm:$0xff]
          %v862 = vld [vmem:[#allocation7 + $0x80] sm:$0xff]
          %v863 = vld [vmem:[#allocation7 + $0x88] sm:$0xff]
          %v864 = vld [vmem:[#allocation7 + $0x90] sm:$0xff]
          %v865 = vld [vmem:[#allocation7 + $0x98] sm:$0xff]
          %v866 = vld [vmem:[#allocation7 + $0xa0] sm:$0xff]
          %v867 = vld [vmem:[#allocation7 + $0xa8] sm:$0xff]
          %v868 = vld [vmem:[#allocation7 + $0xb0] sm:$0xff]
          %v869 = vld [vmem:[#allocation7 + $0xb8] sm:$0xff]
          %v870 = vld [vmem:[#allocation7 + $0xc0] sm:$0xff]
          %v871 = vld [vmem:[#allocation7 + $0xc8] sm:$0xff]
          %v872 = vld [vmem:[#allocation7 + $0xd0] sm:$0xff]
          %v873 = vld [vmem:[#allocation7 + $0xd8] sm:$0xff]
          %v874 = vld [vmem:[#allocation7 + $0xe0] sm:$0xff]
          %v875 = vld [vmem:[#allocation7 + $0xe8] sm:$0xff]
          %v876 = vld [vmem:[#allocation7 + $0xf0] sm:$0xff]
          %v877 = vld [vmem:[#allocation7 + $0xf8] sm:$0xff]
          %v878 = vmul.f32 %v846, %v846
          %v879 = vmul.f32 %v847, %v847
          %v880 = vmul.f32 %v848, %v848
          %v881 = vmul.f32 %v849, %v849
          %v882 = vmul.f32 %v850, %v850
          %v883 = vmul.f32 %v851, %v851
          %v884 = vmul.f32 %v852, %v852
          %v885 = vmul.f32 %v853, %v853
          %v886 = vmul.f32 %v854, %v854
          %v887 = vmul.f32 %v855, %v855
          %v888 = vmul.f32 %v856, %v856
          %v889 = vmul.f32 %v857, %v857
          %v890 = vmul.f32 %v858, %v858
          %v891 = vmul.f32 %v859, %v859
          %v892 = vmul.f32 %v860, %v860
          %v893 = vmul.f32 %v861, %v861
          %v894 = vmul.f32 %v862, %v862
          %v895 = vmul.f32 %v863, %v863
          %v896 = vmul.f32 %v864, %v864
          %v897 = vmul.f32 %v865, %v865
          %v898 = vmul.f32 %v866, %v866
          %v899 = vmul.f32 %v867, %v867
          %v900 = vmul.f32 %v868, %v868
          %v901 = vmul.f32 %v869, %v869
          %v902 = vmul.f32 %v870, %v870
          %v903 = vmul.f32 %v871, %v871
          %v904 = vmul.f32 %v872, %v872
          %v905 = vmul.f32 %v873, %v873
          %v906 = vmul.f32 %v874, %v874
          %v907 = vmul.f32 %v875, %v875
          %v908 = vmul.f32 %v876, %v876
          %v909 = vmul.f32 %v877, %v877
          %910 = vadd.xlane.f32.xlu0 %v878
          %v911 = vpop.xlane.xlu0 %910
          %912 = vadd.xlane.f32.xlu0 %v879
          %v913 = vpop.xlane.xlu0 %912
          %914 = vadd.xlane.f32.xlu0 %v880
          %v915 = vpop.xlane.xlu0 %914
          %916 = vadd.xlane.f32.xlu0 %v881
          %v917 = vpop.xlane.xlu0 %916
          %918 = vadd.xlane.f32.xlu0 %v882
          %v919 = vpop.xlane.xlu0 %918
          %920 = vadd.xlane.f32.xlu0 %v883
          %v921 = vpop.xlane.xlu0 %920
          %922 = vadd.xlane.f32.xlu0 %v884
          %v923 = vpop.xlane.xlu0 %922
          %924 = vadd.xlane.f32.xlu0 %v885
          %v925 = vpop.xlane.xlu0 %924
          %926 = vadd.xlane.f32.xlu0 %v886
          %v927 = vpop.xlane.xlu0 %926
          %928 = vadd.xlane.f32.xlu0 %v887
          %v929 = vpop.xlane.xlu0 %928
          %930 = vadd.xlane.f32.xlu0 %v888
          %v931 = vpop.xlane.xlu0 %930
          %932 = vadd.xlane.f32.xlu0 %v889
          %v933 = vpop.xlane.xlu0 %932
          %934 = vadd.xlane.f32.xlu0 %v890
          %v935 = vpop.xlane.xlu0 %934
          %936 = vadd.xlane.f32.xlu0 %v891
          %v937 = vpop.xlane.xlu0 %936
          %938 = vadd.xlane.f32.xlu0 %v892
          %v939 = vpop.xlane.xlu0 %938
          %940 = vadd.xlane.f32.xlu0 %v893
          %v941 = vpop.xlane.xlu0 %940
          %942 = vadd.xlane.f32.xlu0 %v894
          %v943 = vpop.xlane.xlu0 %942
          %944 = vadd.xlane.f32.xlu0 %v895
          %v945 = vpop.xlane.xlu0 %944
          %946 = vadd.xlane.f32.xlu0 %v896
          %v947 = vpop.xlane.xlu0 %946
          %948 = vadd.xlane.f32.xlu0 %v897
          %v949 = vpop.xlane.xlu0 %948
          %950 = vadd.xlane.f32.xlu0 %v898
          %v951 = vpop.xlane.xlu0 %950
          %952 = vadd.xlane.f32.xlu0 %v899
          %v953 = vpop.xlane.xlu0 %952
          %954 = vadd.xlane.f32.xlu0 %v900
          %v955 = vpop.xlane.xlu0 %954
          %956 = vadd.xlane.f32.xlu0 %v901
          %v957 = vpop.xlane.xlu0 %956
          %958 = vadd.xlane.f32.xlu0 %v902
          %v959 = vpop.xlane.xlu0 %958
          %960 = vadd.xlane.f32.xlu0 %v903
          %v961 = vpop.xlane.xlu0 %960
          %962 = vadd.xlane.f32.xlu0 %v904
          %v963 = vpop.xlane.xlu0 %962
          %964 = vadd.xlane.f32.xlu0 %v905
          %v965 = vpop.xlane.xlu0 %964
          %966 = vadd.xlane.f32.xlu0 %v906
          %v967 = vpop.xlane.xlu0 %966
          %968 = vadd.xlane.f32.xlu0 %v907
          %v969 = vpop.xlane.xlu0 %968
          %970 = vadd.xlane.f32.xlu0 %v908
          %v971 = vpop.xlane.xlu0 %970
          %972 = vadd.xlane.f32.xlu0 %v909
          %v973 = vpop.xlane.xlu0 %972
          %v974 = vmax.f32 %v911, 1e-24
          %v975 = vmax.f32 %v913, 1e-24
          %v976 = vmax.f32 %v915, 1e-24
          %v977 = vmax.f32 %v917, 1e-24
          %v978 = vmax.f32 %v919, 1e-24
          %v979 = vmax.f32 %v921, 1e-24
          %v980 = vmax.f32 %v923, 1e-24
          %v981 = vmax.f32 %v925, 1e-24
          %v982 = vmax.f32 %v927, 1e-24
          %v983 = vmax.f32 %v929, 1e-24
          %v984 = vmax.f32 %v931, 1e-24
          %v985 = vmax.f32 %v933, 1e-24
          %v986 = vmax.f32 %v935, 1e-24
          %v987 = vmax.f32 %v937, 1e-24
          %v988 = vmax.f32 %v939, 1e-24
          %v989 = vmax.f32 %v941, 1e-24
          %v990 = vmax.f32 %v943, 1e-24
          %v991 = vmax.f32 %v945, 1e-24
          %v992 = vmax.f32 %v947, 1e-24
          %v993 = vmax.f32 %v949, 1e-24
          %v994 = vmax.f32 %v951, 1e-24
          %v995 = vmax.f32 %v953, 1e-24
          %v996 = vmax.f32 %v955, 1e-24
          %v997 = vmax.f32 %v957, 1e-24
          %v998 = vmax.f32 %v959, 1e-24
          %v999 = vmax.f32 %v961, 1e-24
          %v1000 = vmax.f32 %v963, 1e-24
          %v1001 = vmax.f32 %v965, 1e-24
          %v1002 = vmax.f32 %v967, 1e-24
          %v1003 = vmax.f32 %v969, 1e-24
          %v1004 = vmax.f32 %v971, 1e-24
          %v1005 = vmax.f32 %v973, 1e-24
          %v1006 = vrsqrt.pop %v974
          %v1007 = vrsqrt.pop %v975
          %v1008 = vrsqrt.pop %v976
          %v1009 = vrsqrt.pop %v977
          %v1010 = vrsqrt.pop %v978
          %v1011 = vrsqrt.pop %v979
          %v1012 = vrsqrt.pop %v980
          %v1013 = vrsqrt.pop %v981
          %v1014 = vrsqrt.pop %v982
          %v1015 = vrsqrt.pop %v983
          %v1016 = vrsqrt.pop %v984
          %v1017 = vrsqrt.pop %v985
          %v1018 = vrsqrt.pop %v986
          %v1019 = vrsqrt.pop %v987
          %v1020 = vrsqrt.pop %v988
          %v1021 = vrsqrt.pop %v989
          %v1022 = vrsqrt.pop %v990
          %v1023 = vrsqrt.pop %v991
          %v1024 = vrsqrt.pop %v992
          %v1025 = vrsqrt.pop %v993
          %v1026 = vrsqrt.pop %v994
          %v1027 = vrsqrt.pop %v995
          %v1028 = vrsqrt.pop %v996
          %v1029 = vrsqrt.pop %v997
          %v1030 = vrsqrt.pop %v998
          %v1031 = vrsqrt.pop %v999
          %v1032 = vrsqrt.pop %v1000
          %v1033 = vrsqrt.pop %v1001
          %v1034 = vrsqrt.pop %v1002
          %v1035 = vrsqrt.pop %v1003
          %v1036 = vrsqrt.pop %v1004
          %v1037 = vrsqrt.pop %v1005
          %v1038 = vmul.f32 %v846, %v1006
          %v1039 = vmul.f32 %v847, %v1007
          %v1040 = vmul.f32 %v848, %v1008
          %v1041 = vmul.f32 %v849, %v1009
          %v1042 = vmul.f32 %v850, %v1010
          %v1043 = vmul.f32 %v851, %v1011
          %v1044 = vmul.f32 %v852, %v1012
          %v1045 = vmul.f32 %v853, %v1013
          %v1046 = vmul.f32 %v854, %v1014
          %v1047 = vmul.f32 %v855, %v1015
          %v1048 = vmul.f32 %v856, %v1016
          %v1049 = vmul.f32 %v857, %v1017
          %v1050 = vmul.f32 %v858, %v1018
          %v1051 = vmul.f32 %v859, %v1019
          %v1052 = vmul.f32 %v860, %v1020
          %v1053 = vmul.f32 %v861, %v1021
          %v1054 = vmul.f32 %v862, %v1022
          %v1055 = vmul.f32 %v863, %v1023
          %v1056 = vmul.f32 %v864, %v1024
          %v1057 = vmul.f32 %v865, %v1025
          %v1058 = vmul.f32 %v866, %v1026
          %v1059 = vmul.f32 %v867, %v1027
          %v1060 = vmul.f32 %v868, %v1028
          %v1061 = vmul.f32 %v869, %v1029
          %v1062 = vmul.f32 %v870, %v1030
          %v1063 = vmul.f32 %v871, %v1031
          %v1064 = vmul.f32 %v872, %v1032
          %v1065 = vmul.f32 %v873, %v1033
          %v1066 = vmul.f32 %v874, %v1034
          %v1067 = vmul.f32 %v875, %v1035
          %v1068 = vmul.f32 %v876, %v1036
          %v1069 = vmul.f32 %v877, %v1037
          %1070 = vst [vmem:[#allocation7] sm:$0xff] %v1038
          %1071 = vst [vmem:[#allocation7 + $0x8] sm:$0xff] %v1039
          %1072 = vst [vmem:[#allocation7 + $0x10] sm:$0xff] %v1040
          %1073 = vst [vmem:[#allocation7 + $0x18] sm:$0xff] %v1041
          %1074 = vst [vmem:[#allocation7 + $0x20] sm:$0xff] %v1042
          %1075 = vst [vmem:[#allocation7 + $0x28] sm:$0xff] %v1043
          %1076 = vst [vmem:[#allocation7 + $0x30] sm:$0xff] %v1044
          %1077 = vst [vmem:[#allocation7 + $0x38] sm:$0xff] %v1045
          %1078 = vst [vmem:[#allocation7 + $0x40] sm:$0xff] %v1046
          %1079 = vst [vmem:[#allocation7 + $0x48] sm:$0xff] %v1047
          %1080 = vst [vmem:[#allocation7 + $0x50] sm:$0xff] %v1048
          %1081 = vst [vmem:[#allocation7 + $0x58] sm:$0xff] %v1049
          %1082 = vst [vmem:[#allocation7 + $0x60] sm:$0xff] %v1050
          %1083 = vst [vmem:[#allocation7 + $0x68] sm:$0xff] %v1051
          %1084 = vst [vmem:[#allocation7 + $0x70] sm:$0xff] %v1052
          %1085 = vst [vmem:[#allocation7 + $0x78] sm:$0xff] %v1053
          %1086 = vst [vmem:[#allocation7 + $0x80] sm:$0xff] %v1054
          %1087 = vst [vmem:[#allocation7 + $0x88] sm:$0xff] %v1055
          %1088 = vst [vmem:[#allocation7 + $0x90] sm:$0xff] %v1056
          %1089 = vst [vmem:[#allocation7 + $0x98] sm:$0xff] %v1057
          %1090 = vst [vmem:[#allocation7 + $0xa0] sm:$0xff] %v1058
          %1091 = vst [vmem:[#allocation7 + $0xa8] sm:$0xff] %v1059
          %1092 = vst [vmem:[#allocation7 + $0xb0] sm:$0xff] %v1060
          %1093 = vst [vmem:[#allocation7 + $0xb8] sm:$0xff] %v1061
          %1094 = vst [vmem:[#allocation7 + $0xc0] sm:$0xff] %v1062
          %1095 = vst [vmem:[#allocation7 + $0xc8] sm:$0xff] %v1063
          %1096 = vst [vmem:[#allocation7 + $0xd0] sm:$0xff] %v1064
          %1097 = vst [vmem:[#allocation7 + $0xd8] sm:$0xff] %v1065
          %1098 = vst [vmem:[#allocation7 + $0xe0] sm:$0xff] %v1066
          %1099 = vst [vmem:[#allocation7 + $0xe8] sm:$0xff] %v1067
          %1100 = vst [vmem:[#allocation7 + $0xf0] sm:$0xff] %v1068
          %1101 = vst [vmem:[#allocation7 + $0xf8] sm:$0xff] %v1069
        $region48: #{tpu_custom_call.1} parent=27 // pred_fallthru
          _
        // Predicated region
        $region49: #{tpu_custom_call.1} parent=27 // pred_check
          %p1102 = pneg %p97
        $region50: #{tpu_custom_call.1} parent=27 // pred_check_branch
          %1104 = sbr.rel (%p1102) target = $region52
        $region51: #{tpu_custom_call.1} parent=27 // pred_region
          %s1105 = smul.u32 32, %s22
          %s1107 = ssub.s32 4096, 4096
          %1108 = vsyncadd [#allocation4], %s1107
          %s1109 = smul.addr %s1105, 128
          %s1110 = scalar_lea.hbm %s2, %s1109
          %s1111 = sshll.u32 [#allocation7], 4
          %s1112 = int_to_ptr.vmem [resolvable:$true] %s1111
          %1117 = dma.vmem_to_hbm [thread:$0]  %s1112, 4096, %s1110, [#allocation4], 128, 128, 8
        $region52: #{tpu_custom_call.1} parent=27 // pred_fallthru
          _
        // Predicated region
        $region53: #{tpu_custom_call.1} parent=27 // pred_check
          %p1118 = pneg %p97
        $region54: #{tpu_custom_call.1} parent=27 // pred_check_branch
          %1120 = sbr.rel (%p1118) target = $region56
        $region55: #{tpu_custom_call.1} parent=27 // pred_region
          %1121 = dma.done [#allocation4], 4096
        $region56: #{tpu_custom_call.1} parent=27 // pred_fallthru
          _
      $region28: #{tpu_custom_call.1} parent=5 // pred_fallthru
        _
      %p1122 = scmp.le.s32.totalorder 2, %s13
      // Predicated region
      $region57: #{tpu_custom_call.1} parent=5 // pred_check
        %p1123 = pneg %p1122
      $region58: #{tpu_custom_call.1} parent=5 // pred_check_branch
        %1125 = sbr.rel (%p1123) target = $region60
      $region59: #{tpu_custom_call.1} parent=5 // pred_region
        %s1126 = ssub.s32 %s13, 2
      $region60: #{tpu_custom_call.1} parent=5 // pred_fallthru
        _
    $region6: #{tpu_custom_call.1} parent=1 // loop_footer
      %s17 = sadd.s32 1, %s13
    $region7: #{tpu_custom_call.1} parent=1 // loop_footer_branch
      %12 = sbr.rel target = $region3
    $region8: #{tpu_custom_call.1} parent=1 // loop_exit
      _
    %1127 = vsyncpa [#allocation3], 1
    %s1128 = scalar_lea.sflag [#allocation3], 1
    %1129 = vsyncpa %s1128, 1
    %1130 = vsyncpa [#allocation6], 1
    %1131 = vsyncpa [#allocation4], 1
    %s1132 = scalar_lea.sflag [#allocation4], 1
    %1133 = vsyncpa %s1132, 1

</llo_original>
